<compile_context>
chip_gen: v5e
topology: v5e:2x2
jax: 0.10.0
libtpu: 0.0.40
codegen_flags: <defaults>
</compile_context>

<pallas_src>
import functools

import jax
import jax.numpy as jnp
from jax.experimental import pallas as pl
from jax.experimental.pallas import tpu as pltpu

LANES = 128                       # vreg lane width (last dim)
SUBLANES = 8                      # f32 vreg sublane count
TARGET_BLOCK_BYTES = 4 * 1024 * 1024   # per input per grid step (~4 MiB)
MAX_TILE_ROWS = 16384             # hard cap on rows per block
MAX_ACC_K = 8                     # independent accumulator vregs (ILP)
VMEM_LIMIT_BYTES = 32 * 1024 * 1024    # 2 inputs x 2 buffers x 4 MiB = 16 MiB used


def _choose_tile_rows(rows_avail, itemsize):
    """Pick a row-tile: ~4 MiB per input per step, multiple of 64 when possible."""
    max_rows = min(MAX_TILE_ROWS, TARGET_BLOCK_BYTES // (LANES * itemsize))
    max_rows = max(SUBLANES, (max_rows // 64) * 64)
    if rows_avail >= 64:
        return min(max_rows, (rows_avail // 64) * 64)
    if rows_avail >= SUBLANES:
        return (rows_avail // SUBLANES) * SUBLANES
    return SUBLANES


def _quantile_loss_kernel(q_ref, yp_ref, yt_ref, o_ref, *, acc_k):
    """Accumulate pinball-loss partial sums into the resident output block."""
    i = pl.program_id(0)

    @pl.when(i == 0)
    def _():
        o_ref[...] = jnp.zeros_like(o_ref)

    q = q_ref[0]  # SMEM scalar
    err = yt_ref[...].astype(jnp.float32) - yp_ref[...].astype(jnp.float32)
    loss = jnp.maximum((q - 1.0) * err, q * err)

    tile_rows = loss.shape[0]
    # acc_k independent (8,128) accumulator vregs: keeps the per-step
    # dependent-add chain short; the final reduction happens in the wrapper.
    part = loss.reshape(tile_rows // (acc_k * SUBLANES), acc_k, SUBLANES, LANES)
    o_ref[...] += part.sum(axis=0)


def quantile_loss(y_pred, y_true, quantile):
    """mean(max((q - 1) * (y_true - y_pred), q * (y_true - y_pred)))."""
    assert y_pred.shape == y_true.shape, "y_pred / y_true shape mismatch"
    n_elems = y_pred.size
    if n_elems == 0:
        return jnp.float32(jnp.nan)

    q_arr = jnp.asarray(quantile, dtype=jnp.float32).reshape(1)

    # Keep native dtype (kernel upcasts on the VPU); flatten is free.
    yp = y_pred.reshape(-1)
    yt = y_true.reshape(-1)

    itemsize = max(jnp.dtype(y_pred.dtype).itemsize, jnp.dtype(y_true.dtype).itemsize)
    rows_avail = n_elems // LANES
    tile_rows = _choose_tile_rows(rows_avail, itemsize)
    n_tiles = rows_avail // tile_rows          # full, in-bounds tiles only
    covered = n_tiles * tile_rows * LANES

    tail_p = tail_t = None
    if n_tiles == 0:
        # Tiny input (< one tile): zero-pad both operands (exact: loss(0,0)=0).
        pad = tile_rows * LANES - n_elems
        yp_main = jnp.pad(yp, (0, pad)).reshape(tile_rows, LANES)
        yt_main = jnp.pad(yt, (0, pad)).reshape(tile_rows, LANES)
        n_tiles = 1
    elif covered == n_elems:
        # Fully covered: pure reshape, zero copies.
        yp_main = yp.reshape(rows_avail, LANES)
        yt_main = yt.reshape(rows_avail, LANES)
    elif n_elems % LANES == 0:
        # Lane-aligned: reshape the whole array (free); the grid only visits
        # the first n_tiles full blocks, the small leftover goes to plain JAX.
        yp_main = yp.reshape(rows_avail, LANES)
        yt_main = yt.reshape(rows_avail, LANES)
        tail_p = yp[covered:]
        tail_t = yt[covered:]
    else:
        # Lane-unaligned: slice only the aligned prefix (no full-array zero
        # pad); leftover (< one tile + 128) summed in plain JAX.
        yp_main = yp[:covered].reshape(-1, LANES)
        yt_main = yt[:covered].reshape(-1, LANES)
        tail_p = yp[covered:]
        tail_t = yt[covered:]

    chunk = tile_rows // SUBLANES
    acc_k = chunk if chunk <= MAX_ACC_K else MAX_ACC_K
    assert tile_rows % (acc_k * SUBLANES) == 0

    kernel = functools.partial(_quantile_loss_kernel, acc_k=acc_k)
    in_spec = pl.BlockSpec((tile_rows, LANES), lambda i: (i, 0))

    partials = pl.pallas_call(
        kernel,
        out_shape=jax.ShapeDtypeStruct((acc_k, SUBLANES, LANES), jnp.float32),
        grid_spec=pltpu.PrefetchScalarGridSpec(
            num_scalar_prefetch=0,
            grid=(n_tiles,),
            in_specs=[
                pl.BlockSpec(memory_space=pltpu.MemorySpace.SMEM),  # quantile
                in_spec,
                in_spec,
            ],
            out_specs=pl.BlockSpec((acc_k, SUBLANES, LANES), lambda i: (0, 0, 0)),
        ),
        compiler_params=pltpu.CompilerParams(
            dimension_semantics=("arbitrary",),
            vmem_limit_bytes=VMEM_LIMIT_BYTES,
        ),
    )(q_arr, yp_main, yt_main)

    total = jnp.sum(partials)
    if tail_p is not None:
        q32 = q_arr[0]
        err = tail_t.astype(jnp.float32) - tail_p.astype(jnp.float32)
        total = total + jnp.sum(jnp.maximum((q32 - 1.0) * err, q32 * err))

    return total / jnp.float32(n_elems)


if __name__ == "__main__":
    key = jax.random.PRNGKey(0)
    k1, k2 = jax.random.split(key)

    # Small NCHW-like regression-head shapes.
    shape = (2, 4, 16, 16)
    quantile = 0.9
    y_pred = jax.random.normal(k1, shape, dtype=jnp.float32)
    y_true = jax.random.normal(k2, shape, dtype=jnp.float32)

    loss = quantile_loss(y_pred, y_true, quantile)
    jax.block_until_ready(loss)

    # Reference check against plain JAX (matches the PyTorch module).
    errors = y_true - y_pred
    ref = jnp.mean(jnp.maximum((quantile - 1.0) * errors, quantile * errors))
    assert jnp.allclose(loss, ref, rtol=1e-5, atol=1e-6), (loss, ref)

    print("KERNEL_OK")
</pallas_src>

<mosaic_0001>
module attributes {stable_mosaic.version = 11 : i64} {
  func.func @_quantile_loss_kernel(%arg0: i32, %arg1: memref<1xf32, #tpu.memory_space<smem>>, %arg2: memref<16x128xf32, #tpu.memory_space<vmem>>, %arg3: memref<16x128xf32, #tpu.memory_space<vmem>>, %arg4: memref<2x8x128xf32, #tpu.memory_space<vmem>>) attributes {dimension_semantics = [#tpu.dimension_semantics<arbitrary>], iteration_bounds = array<i64: 1>, scalar_prefetch = 0 : i64, scratch_operands = 0 : i64, tpu.core_type = #tpu.core_type<tc>, window_params = [{transform_indices = @transform_0, window_bounds = array<i64: 1>}, {transform_indices = @transform_1, window_bounds = array<i64: 16, 128>}, {transform_indices = @transform_2, window_bounds = array<i64: 16, 128>}, {pipeline_mode = #tpu.pipeline_mode<synchronous>, transform_indices = @transform_3, window_bounds = array<i64: 2, 8, 128>}]} {
    %c0_i32 = arith.constant 0 : i32
    %0 = arith.cmpi eq, %arg0, %c0_i32 : i32
    %1 = arith.extui %0 : i1 to i32
    %c0_i32_0 = arith.constant 0 : i32
    %2 = arith.cmpi ne, %1, %c0_i32_0 : i32
    scf.if %2 {
      %cst_12 = arith.constant 0.000000e+00 : f32
      %18 = vector.broadcast %cst_12 : f32 to vector<2x8x128xf32>
      %c0_13 = arith.constant 0 : index
      %c0_14 = arith.constant 0 : index
      %c0_15 = arith.constant 0 : index
      %19 = vector.load %arg4[%c0_13, %c0_14, %c0_15] : memref<2x8x128xf32, #tpu.memory_space<vmem>>, vector<2x8x128xf32>
      tpu.vector_store %arg4[%c0_13, %c0_14, %c0_15], %18 {strides = array<i32>} : memref<2x8x128xf32, #tpu.memory_space<vmem>>, vector<2x8x128xf32>,
    } else {
    }
    %c0 = arith.constant 0 : index
    %3 = memref.load %arg1[%c0] : memref<1xf32, #tpu.memory_space<smem>>
    %c0_1 = arith.constant 0 : index
    %c0_2 = arith.constant 0 : index
    %4 = vector.load %arg3[%c0_1, %c0_2] : memref<16x128xf32, #tpu.memory_space<vmem>>, vector<16x128xf32>
    %c0_3 = arith.constant 0 : index
    %c0_4 = arith.constant 0 : index
    %5 = vector.load %arg2[%c0_3, %c0_4] : memref<16x128xf32, #tpu.memory_space<vmem>>, vector<16x128xf32>
    %6 = arith.subf %4, %5 : vector<16x128xf32>
    %cst = arith.constant 1.000000e+00 : f32
    %7 = arith.subf %3, %cst : f32
    %8 = vector.broadcast %7 : f32 to vector<16x128xf32>
    %9 = arith.mulf %8, %6 : vector<16x128xf32>
    %10 = vector.broadcast %3 : f32 to vector<16x128xf32>
    %11 = arith.mulf %10, %6 : vector<16x128xf32>
    %12 = arith.maximumf %9, %11 : vector<16x128xf32>
    %13 = vector.shape_cast %12 : vector<16x128xf32> to vector<1x2x8x128xf32>
    %c0_5 = arith.constant 0 : index
    %c0_6 = arith.constant 0 : index
    %c0_7 = arith.constant 0 : index
    %14 = vector.load %arg4[%c0_5, %c0_6, %c0_7] : memref<2x8x128xf32, #tpu.memory_space<vmem>>, vector<2x8x128xf32>
    %cst_8 = arith.constant dense<0.000000e+00> : vector<2x8x128xf32>
    %15 = vector.multi_reduction <add>, %13, %cst_8 [0] : vector<1x2x8x128xf32> to vector<2x8x128xf32>
    %16 = arith.addf %14, %15 : vector<2x8x128xf32>
    %c0_9 = arith.constant 0 : index
    %c0_10 = arith.constant 0 : index
    %c0_11 = arith.constant 0 : index
    %17 = vector.load %arg4[%c0_9, %c0_10, %c0_11] : memref<2x8x128xf32, #tpu.memory_space<vmem>>, vector<2x8x128xf32>
    tpu.vector_store %arg4[%c0_9, %c0_10, %c0_11], %16 {strides = array<i32>} : memref<2x8x128xf32, #tpu.memory_space<vmem>>, vector<2x8x128xf32>,
    return
  }
  func.func @transform_0(%arg0: i32) -> i32 {
    %c0_i32 = arith.constant 0 : i32
    %c0_i32_0 = arith.constant 0 : i32
    return %c0_i32 : i32
  }
  func.func @transform_1(%arg0: i32) -> (i32, i32) {
    %c0_i32 = arith.constant 0 : i32
    %c0_i32_0 = arith.constant 0 : i32
    return %arg0, %c0_i32 : i32, i32
  }
  func.func @transform_2(%arg0: i32) -> (i32, i32) {
    %c0_i32 = arith.constant 0 : i32
    %c0_i32_0 = arith.constant 0 : i32
    return %arg0, %c0_i32 : i32, i32
  }
  func.func @transform_3(%arg0: i32) -> (i32, i32, i32) {
    %c0_i32 = arith.constant 0 : i32
    %c0_i32_0 = arith.constant 0 : i32
    %c0_i32_1 = arith.constant 0 : i32
    %c0_i32_2 = arith.constant 0 : i32
    return %c0_i32, %c0_i32_0, %c0_i32_1 : i32, i32, i32
  }
}

</mosaic_0001>

<llo_original>
// kernel: tpu_custom_call.1
$region0: #{tpu_custom_call.1}
  #allocation0 [shape = 'u32[]', space=smem, size = 0x4, offset = 0x4, fixed_abs, tag = 'smem constant byte address 0x4 - core index']
  #allocation1 [shape = 'u32[72,128]{1,0:T(1,128)}', space=vmem, size = 0x9000, scoped, tag = 'internal scratch']
  #allocation2 [shape = 'f32[1]{0:T(128)S(6)}', space=smem, size = 0x200, scoped, tag = 'scoped memory for tpu_custom_call.1']
  %s0 = inlined_call_operand.<no memory space> [shape: f32[1], index: 0, kind: input, shape index: {}]
  %s1 = inlined_call_operand.hbm [shape: f32[16,128], index: 1, kind: input, shape index: {}]
  %s2 = inlined_call_operand.hbm [shape: f32[16,128], index: 2, kind: input, shape index: {}]
  %s3 = inlined_call_operand.hbm [shape: f32[2,8,128], index: 3, kind: output, shape index: {}]
  %s4 = sld [smem:[#allocation0]]
  $region34: #{tpu_custom_call.1} parent=0
    _
  %s6 = ssub.s32 1, %s4
  %s7 = scalar_select 0, %s6, %s4
  %8 = sst [smem:[#allocation2]] %s0
  $region1: #{tpu_custom_call.1} parent=0
    #allocation3 [shape = 'u8[8192]{0}', space=vmem, size = 0x2000, scoped, tag = 'input window, operand 1, single buffered']
    #allocation4 [shape = 's32[1]{0}', space=sflag, size = 0x4, scoped, tag = 'scoped memory for tpu_custom_call.1']
    #allocation5 [shape = 's32[1]{0}', space=sflag, size = 0x4, scoped, tag = 'scoped memory for tpu_custom_call.1']
    #allocation6 [shape = 'u8[8192]{0}', space=vmem, size = 0x2000, scoped, tag = 'input window, operand 2, single buffered']
    #allocation7 [shape = 's32[1]{0}', space=sflag, size = 0x4, scoped, tag = 'scoped memory for tpu_custom_call.1']
    #allocation8 [shape = 'u8[8192]{0}', space=vmem, size = 0x2000, scoped, tag = 'output window, operand 0, single buffered']
    %9 = vsyncpa [#allocation4], 0
    %10 = vsyncpa [#allocation7], 0
    %11 = vsyncpa [#allocation5], 0
    // Predicated region
    $region2: #{tpu_custom_call.1} parent=1 // pred_check
      _
    $region3: #{tpu_custom_call.1} parent=1 // pred_check_branch
      %13 = sbr.rel (0) target = $region5
    $region4: #{tpu_custom_call.1} parent=1 // pred_region
      _
    $region5: #{tpu_custom_call.1} parent=1 // pred_fallthru
      _
    // Predicated region
    $region6: #{tpu_custom_call.1} parent=1 // pred_check
      _
    $region7: #{tpu_custom_call.1} parent=1 // pred_check_branch
      %15 = sbr.rel (0) target = $region9
    $region8: #{tpu_custom_call.1} parent=1 // pred_region
      %17 = vsyncadd [#allocation4], 0
      %s18 = sshll.u32 %s1, 4
      %s19 = int_to_ptr.hbm [resolvable:$true] %s18
      %s20 = sshll.u32 [#allocation3], 4
      %s21 = int_to_ptr.vmem [resolvable:$true] %s20
      %26 = dma.hbm_to_vmem [thread:$0]  %s19, 256, %s21, [#allocation4], 128, 128, 8
    $region9: #{tpu_custom_call.1} parent=1 // pred_fallthru
      _
    // Predicated region
    $region10: #{tpu_custom_call.1} parent=1 // pred_check
      _
    $region11: #{tpu_custom_call.1} parent=1 // pred_check_branch
      %28 = sbr.rel (0) target = $region13
    $region12: #{tpu_custom_call.1} parent=1 // pred_region
      %30 = vsyncadd [#allocation7], 0
      %s31 = sshll.u32 %s2, 4
      %s32 = int_to_ptr.hbm [resolvable:$true] %s31
      %s33 = sshll.u32 [#allocation6], 4
      %s34 = int_to_ptr.vmem [resolvable:$true] %s33
      %39 = dma.hbm_to_vmem [thread:$0]  %s32, 256, %s34, [#allocation7], 128, 128, 8
    $region13: #{tpu_custom_call.1} parent=1 // pred_fallthru
      _
    // Predicated region
    $region14: #{tpu_custom_call.1} parent=1 // pred_check
      _
    $region15: #{tpu_custom_call.1} parent=1 // pred_check_branch
      %41 = sbr.rel (0) target = $region17
    $region16: #{tpu_custom_call.1} parent=1 // pred_region
      %43 = dma.done [#allocation4], 256
    $region17: #{tpu_custom_call.1} parent=1 // pred_fallthru
      _
    // Predicated region
    $region18: #{tpu_custom_call.1} parent=1 // pred_check
      _
    $region19: #{tpu_custom_call.1} parent=1 // pred_check_branch
      %45 = sbr.rel (0) target = $region21
    $region20: #{tpu_custom_call.1} parent=1 // pred_region
      %47 = dma.done [#allocation7], 256
    $region21: #{tpu_custom_call.1} parent=1 // pred_fallthru
      _
    %p48 = scmp.eq.s32.totalorder 0, 0
    // Predicated region
    $region22: #{tpu_custom_call.1} parent=1 // pred_check
      %p49 = pneg %p48
    $region23: #{tpu_custom_call.1} parent=1 // pred_check_branch
      %51 = sbr.rel (%p49) target = $region25
    $region24: #{tpu_custom_call.1} parent=1 // pred_region
      %52 = vst [vmem:[#allocation8] sm:$0xff] 0.0
      %53 = vst [vmem:[#allocation8 + $0x8] sm:$0xff] 0.0
    $region25: #{tpu_custom_call.1} parent=1 // pred_fallthru
      _
    %s54 = sld [smem:[#allocation2]]
    %v55 = vld [vmem:[#allocation6] sm:$0xff]
    %v56 = vld [vmem:[#allocation6 + $0x8] sm:$0xff]
    %v57 = vld [vmem:[#allocation3] sm:$0xff]
    %v58 = vld [vmem:[#allocation3 + $0x8] sm:$0xff]
    %v59 = vsub.f32 %v55, %v57
    %v60 = vsub.f32 %v56, %v58
    %s61 = ssub.f32 %s54, 1.0
    %v62 = vstv %s61
    %v63 = vmul.f32 %v62, %v59
    %v64 = vmul.f32 %v62, %v60
    %v65 = vstv %s54
    %v66 = vmul.f32 %v65, %v59
    %v67 = vmul.f32 %v65, %v60
    %v68 = vmax.f32 %v63, %v66
    %v69 = vmax.f32 %v64, %v67
    %v70 = vld [vmem:[#allocation8] sm:$0xff]
    %v71 = vld [vmem:[#allocation8 + $0x8] sm:$0xff]
    %v72 = vadd.f32 %v68, 0.0
    %v73 = vadd.f32 %v69, 0.0
    %v74 = vadd.f32 %v70, %v72
    %v75 = vadd.f32 %v71, %v73
    %76 = vst [vmem:[#allocation8] sm:$0xff] %v74
    %77 = vst [vmem:[#allocation8 + $0x8] sm:$0xff] %v75
    // Predicated region
    $region26: #{tpu_custom_call.1} parent=1 // pred_check
      _
    $region27: #{tpu_custom_call.1} parent=1 // pred_check_branch
      %79 = sbr.rel (0) target = $region29
    $region28: #{tpu_custom_call.1} parent=1 // pred_region
      %81 = vsyncadd [#allocation5], 0
      %s82 = sshll.u32 [#allocation8], 4
      %s83 = int_to_ptr.vmem [resolvable:$true] %s82
      %s84 = sshll.u32 %s3, 4
      %s85 = int_to_ptr.hbm [resolvable:$true] %s84
      %90 = dma.vmem_to_hbm [thread:$0]  %s83, 256, %s85, [#allocation5], 128, 128, 8
    $region29: #{tpu_custom_call.1} parent=1 // pred_fallthru
      _
    // Predicated region
    $region30: #{tpu_custom_call.1} parent=1 // pred_check
      _
    $region31: #{tpu_custom_call.1} parent=1 // pred_check_branch
      %92 = sbr.rel (0) target = $region33
    $region32: #{tpu_custom_call.1} parent=1 // pred_region
      %94 = dma.done [#allocation5], 256
    $region33: #{tpu_custom_call.1} parent=1 // pred_fallthru
      _
    %95 = vsyncpa [#allocation4], 1
    %96 = vsyncpa [#allocation7], 1
    %97 = vsyncpa [#allocation5], 1

</llo_original>
